<compile_context>
chip_gen: v6e
topology: v6e:2x2x1
jax: 0.10.0
libtpu: 0.0.40
codegen_flags: <defaults>
</compile_context>

<pallas_src>
import jax
import jax.numpy as jnp
from jax.experimental import pallas as pl
from jax.experimental.pallas import tpu as pltpu

BN_EPS = 1e-5
LANE = 128


def _round_up(x: int, m: int) -> int:
    return ((x + m - 1) // m) * m


def _pad_dim(d: int) -> int:
    """Round a feature dim up to a multiple of the 128-wide lane dimension."""
    return max(LANE, _round_up(d, LANE))


def _vmem_limit_bytes() -> int:
    """Generation-aware VMEM budget (v5e/v6e ~96 MiB, v7x ~48 MiB)."""
    try:
        cap = int(pltpu.get_tpu_info().vmem_capacity_bytes)
        return max(32 * 1024 * 1024, min((cap * 3) // 4, 100 * 1024 * 1024))
    except Exception:
        return 48 * 1024 * 1024  # conservative fallback valid on v5e/v6e/v7x


def _cost(rows: int, d_in: int, d_out: int, w_itemsize: int,
          transcendentals: int) -> pl.CostEstimate:
    return pl.CostEstimate(
        flops=2 * rows * d_in * d_out,
        transcendentals=transcendentals,
        bytes_accessed=(rows * d_in * 4 + d_in * d_out * w_itemsize
                        + rows * d_out * 4),
    )


# --------------------------------------------------------------------------- #
# Kernel bodies
# --------------------------------------------------------------------------- #

def _write_partial_stats(z, s_ref):
    """Per-tile per-feature sum and sum-of-squares -> [1, 2, D] output block."""
    ssum = jnp.sum(z, axis=0, keepdims=True)          # [1, D]
    ssq = jnp.sum(z * z, axis=0, keepdims=True)       # [1, D]
    # NOTE: for very large batch tiles these cross-sublane reduces could be
    # offloaded to the MXU via a ones-row matmul; at tile<=256 rows the XLU
    # reduce is not the bottleneck.
    s_ref[...] = jnp.concatenate([ssum, ssq], axis=0)[None, :, :]


def _make_first_kernel(compute_dtype):
    """Layer 0: z = x @ W0 per batch tile + partial BN stats."""

    def kernel(x_ref, w_ref, z_ref, s_ref):
        z = jnp.dot(x_ref[...].astype(compute_dtype), w_ref[...],
                    preferred_element_type=jnp.float32)
        z_ref[...] = z
        _write_partial_stats(z, s_ref)

    return kernel


def _make_mid_kernel(compute_dtype, n_real: int, tm: int, need_mask: bool):
    """Apply layer (l-1) BN+ReLU (fused scale/shift FMA) then z = h @ W_l,
    plus partial BN stats for layer l."""
    inv_n = 1.0 / float(n_real)

    def kernel(s_in_ref, g_ref, b_ref, z_in_ref, w_ref, z_ref, s_ref):
        # Finish BN for the previous layer from the globally-reduced sums.
        s = s_in_ref[...]                              # [2, D_l]
        mean = s[0:1, :] * inv_n
        ex2 = s[1:2, :] * inv_n
        var = jnp.maximum(ex2 - mean * mean, 0.0)      # clamp: no NaN from rsqrt
        scale = jax.lax.rsqrt(var + BN_EPS) * g_ref[...]
        shift = b_ref[...] - mean * scale
        # Single FMA pass + ReLU (no separate `centered` temporary).
        h = jnp.maximum(z_in_ref[...] * scale + shift, 0.0)
        if need_mask:
            # Padded batch rows would otherwise become relu(shift) != 0 and
            # corrupt the NEXT layer's statistics -> zero them out.
            rows = (jax.lax.broadcasted_iota(jnp.int32, h.shape, 0)
                    + pl.program_id(0) * tm)
            h = jnp.where(rows < n_real, h, 0.0)
        z = jnp.dot(h.astype(compute_dtype), w_ref[...],
                    preferred_element_type=jnp.float32)
        z_ref[...] = z
        _write_partial_stats(z, s_ref)

    return kernel


def _make_last_kernel(n_real: int):
    """Apply the final layer's BN+ReLU per batch tile."""
    inv_n = 1.0 / float(n_real)

    def kernel(s_in_ref, g_ref, b_ref, z_in_ref, o_ref):
        s = s_in_ref[...]
        mean = s[0:1, :] * inv_n
        ex2 = s[1:2, :] * inv_n
        var = jnp.maximum(ex2 - mean * mean, 0.0)
        scale = jax.lax.rsqrt(var + BN_EPS) * g_ref[...]
        shift = b_ref[...] - mean * scale
        o_ref[...] = jnp.maximum(z_in_ref[...] * scale + shift, 0.0)

    return kernel


# --------------------------------------------------------------------------- #
# Parameter preparation (ONE-TIME: lane padding + dtype cast hoisted out of
# the forward pass)
# --------------------------------------------------------------------------- #

def prepare_encoder_params(params, *, use_bf16_matmul=True):
    """Pad each layer's w_t [D_in, D_out] / gamma / beta to lane multiples once.

    Zero-padding invariant: padded weight rows/cols and gamma/beta lanes are
    zero, so padded activation lanes stay exactly 0 through every layer
    (sum=0 -> mean=0, var=0 -> scale=0, shift=0 -> relu(0)=0).
    """
    compute_dtype = jnp.bfloat16 if use_bf16_matmul else jnp.float32
    layers = []
    for p in params:
        di, do = int(p["w_t"].shape[0]), int(p["w_t"].shape[1])
        dip, dop = _pad_dim(di), _pad_dim(do)
        w_p = jnp.zeros((dip, dop), compute_dtype)
        w_p = w_p.at[:di, :do].set(p["w_t"].astype(compute_dtype))
        g_p = jnp.zeros((1, dop), jnp.float32).at[:, :do].set(
            p["gamma"].reshape(1, -1))
        b_p = jnp.zeros((1, dop), jnp.float32).at[:, :do].set(
            p["beta"].reshape(1, -1))
        layers.append(dict(w=w_p, gamma=g_p, beta=b_p, d_in=di, d_out=do))
    return dict(layers=layers, compute_dtype=compute_dtype)


# --------------------------------------------------------------------------- #
# Forward pass
# --------------------------------------------------------------------------- #

def encoder_forward(prepared, x):
    """Encoder.forward: batch-tiled, two-pass BN, per-layer Pallas kernels."""
    layers = prepared["layers"]
    if not layers:
        return x  # Encoder with len(layer_dims) <= 1 is the identity.
    compute_dtype = prepared["compute_dtype"]
    w_isz = jnp.dtype(compute_dtype).itemsize

    n, d_in = x.shape
    assert d_in == layers[0]["d_in"], "input feature dim mismatch"

    # Batch tiling: 256-row tiles fill the 256-wide MXU on v6e/v7x.
    tm_target = 256
    n8 = _round_up(n, 8)
    tm = n8 if n8 <= tm_target else tm_target
    n_pad = _round_up(n8, tm)
    num_tiles = n_pad // tm
    need_mask = (n_pad != n)

    cp = pltpu.CompilerParams(
        dimension_semantics=("parallel",),      # independent batch tiles (v7x: 2 TCs)
        vmem_limit_bytes=_vmem_limit_bytes(),
    )

    # Per-call activation padding only (weights were padded once at prep time).
    d0p = _pad_dim(d_in)
    x_p = jnp.zeros((n_pad, d0p), compute_dtype)
    x_p = x_p.at[:n, :d_in].set(x.astype(compute_dtype))

    # ---- layer 0: matmul + partial stats --------------------------------- #
    l0 = layers[0]
    d1p = int(l0["w"].shape[1])
    z, parts = pl.pallas_call(
        _make_first_kernel(compute_dtype),
        grid=(num_tiles,),
        in_specs=[
            pl.BlockSpec((tm, d0p), lambda i: (i, 0)),          # x tile
            pl.BlockSpec((d0p, d1p), lambda i: (0, 0)),         # W0 (resident)
        ],
        out_specs=(
            pl.BlockSpec((tm, d1p), lambda i: (i, 0)),          # z tile
            pl.BlockSpec((1, 2, d1p), lambda i: (i, 0, 0)),     # partial stats
        ),
        out_shape=(
            jax.ShapeDtypeStruct((n_pad, d1p), jnp.float32),
            jax.ShapeDtypeStruct((num_tiles, 2, d1p), jnp.float32),
        ),
        compiler_params=cp,
        cost_estimate=_cost(n_pad, d0p, d1p, w_isz, 0),
    )(x_p, l0["w"])
    stats = jnp.sum(parts, axis=0)                              # [2, d1p]

    # ---- layers 1..L-1: fused (prev BN+ReLU) -> matmul + partial stats ---- #
    for l in range(1, len(layers)):
        prev, cur = layers[l - 1], layers[l]
        dlp = int(cur["w"].shape[0])
        dnp = int(cur["w"].shape[1])
        z, parts = pl.pallas_call(
            _make_mid_kernel(compute_dtype, n, tm, need_mask),
            grid=(num_tiles,),
            in_specs=[
                pl.BlockSpec((2, dlp), lambda i: (0, 0)),       # reduced stats
                pl.BlockSpec((1, dlp), lambda i: (0, 0)),       # gamma (prev)
                pl.BlockSpec((1, dlp), lambda i: (0, 0)),       # beta  (prev)
                pl.BlockSpec((tm, dlp), lambda i: (i, 0)),      # z tile (prev)
                pl.BlockSpec((dlp, dnp), lambda i: (0, 0)),     # W_l (resident)
            ],
            out_specs=(
                pl.BlockSpec((tm, dnp), lambda i: (i, 0)),
                pl.BlockSpec((1, 2, dnp), lambda i: (i, 0, 0)),
            ),
            out_shape=(
                jax.ShapeDtypeStruct((n_pad, dnp), jnp.float32),
                jax.ShapeDtypeStruct((num_tiles, 2, dnp), jnp.float32),
            ),
            compiler_params=cp,
            cost_estimate=_cost(n_pad, dlp, dnp, w_isz, dlp),
        )(stats, prev["gamma"], prev["beta"], z, cur["w"])
        stats = jnp.sum(parts, axis=0)

    # ---- final BN + ReLU apply -------------------------------------------- #
    last = layers[-1]
    dlast = int(last["w"].shape[1])
    out_p = pl.pallas_call(
        _make_last_kernel(n),
        grid=(num_tiles,),
        in_specs=[
            pl.BlockSpec((2, dlast), lambda i: (0, 0)),
            pl.BlockSpec((1, dlast), lambda i: (0, 0)),
            pl.BlockSpec((1, dlast), lambda i: (0, 0)),
            pl.BlockSpec((tm, dlast), lambda i: (i, 0)),
        ],
        out_specs=pl.BlockSpec((tm, dlast), lambda i: (i, 0)),
        out_shape=jax.ShapeDtypeStruct((n_pad, dlast), jnp.float32),
        compiler_params=cp,
        cost_estimate=pl.CostEstimate(
            flops=3 * n_pad * dlast, transcendentals=dlast,
            bytes_accessed=2 * n_pad * dlast * 4),
    )(stats, last["gamma"], last["beta"], z)

    return out_p[:n, :last["d_out"]]


# --------------------------------------------------------------------------- #
# Parameter init + pure-JAX reference (PyTorch-module-faithful, bias included)
# --------------------------------------------------------------------------- #

def init_encoder_params(key, layer_dims):
    """PyTorch-Linear-style uniform init.  The Linear bias 'b' is kept here and
    in the reference for fidelity, but the kernel does not consume it: under
    training-mode BatchNorm the mean subtraction cancels it exactly."""
    params = []
    for in_f, out_f in zip(layer_dims[:-1], layer_dims[1:]):
        key, kw, kb, kg, kbt = jax.random.split(key, 5)
        bound = 1.0 / jnp.sqrt(jnp.float32(in_f))
        w = jax.random.uniform(kw, (out_f, in_f), jnp.float32, -bound, bound)
        b = jax.random.uniform(kb, (out_f,), jnp.float32, -bound, bound)
        # PyTorch init is gamma=1, beta=0; perturb slightly so the affine path
        # is actually exercised by the correctness checks.
        gamma = 1.0 + 0.1 * jax.random.normal(kg, (out_f,), jnp.float32)
        beta = 0.1 * jax.random.normal(kbt, (out_f,), jnp.float32)
        params.append(dict(w_t=jnp.asarray(w.T),            # [in_f, out_f]
                           b=b.reshape(1, out_f),
                           gamma=gamma.reshape(1, out_f),
                           beta=beta.reshape(1, out_f)))
    return params


def encoder_reference(params, x):
    """Pure-JAX reference matching the PyTorch module (bias included)."""
    for p in params:
        h = x @ p["w_t"] + p["b"]
        mean = jnp.mean(h, axis=0, keepdims=True)
        var = jnp.mean((h - mean) ** 2, axis=0, keepdims=True)
        y = (h - mean) / jnp.sqrt(var + BN_EPS) * p["gamma"] + p["beta"]
        x = jnp.maximum(y, 0.0)
    return x


if __name__ == "__main__":
    layer_dims = [32, 16, 8]
    key = jax.random.PRNGKey(0)
    key, kx = jax.random.split(key)
    params = init_encoder_params(key, layer_dims)

    # --- small exact test: batch=8, single tile, f32 MXU path -------------- #
    x_small = jax.random.normal(kx, (8, layer_dims[0]), jnp.float32)
    ref_small = encoder_reference(params, x_small)
    prep_f32 = prepare_encoder_params(params, use_bf16_matmul=False)
    out_small = jax.block_until_ready(encoder_forward(prep_f32, x_small))
    assert out_small.shape == (8, layer_dims[-1])
    assert jnp.allclose(out_small, ref_small, atol=1e-3, rtol=1e-3)

    # --- multi-tile + row-mask test: batch=300 (2x 256-row tiles on a padded
    #     batch of 512), default bf16 MXU path (f32 accumulation / f32 BN) --- #
    key, kx2 = jax.random.split(key)
    x_big = jax.random.normal(kx2, (300, layer_dims[0]), jnp.float32)
    ref_big = encoder_reference(params, x_big)
    prep_bf16 = prepare_encoder_params(params)               # bf16 is default
    out_big = jax.block_until_ready(encoder_forward(prep_bf16, x_big))
    assert out_big.shape == (300, layer_dims[-1])
    assert bool(jnp.all(jnp.isfinite(out_big)))
    assert jnp.allclose(out_big, ref_big, atol=2e-1, rtol=1e-1)

    print("KERNEL_OK")
</pallas_src>

<mosaic_0001>
module attributes {stable_mosaic.version = 11 : i64} {
  func.func @kernel(%arg0: i32, %arg1: memref<8x128xf32, #tpu.memory_space<vmem>>, %arg2: memref<128x128xf32, #tpu.memory_space<vmem>>, %arg3: memref<8x128xf32, #tpu.memory_space<vmem>>, %arg4: memref<1x2x128xf32, #tpu.memory_space<vmem>>) attributes {dimension_semantics = [#tpu.dimension_semantics<parallel>], iteration_bounds = array<i64: 1>, scalar_prefetch = 0 : i64, scratch_operands = 0 : i64, tpu.core_type = #tpu.core_type<tc>, window_params = [{transform_indices = @transform_0, window_bounds = array<i64: 8, 128>}, {pipeline_mode = #tpu.pipeline_mode<synchronous>, transform_indices = @transform_1, window_bounds = array<i64: 128, 128>}, {transform_indices = @transform_2, window_bounds = array<i64: 8, 128>}, {transform_indices = @transform_3, window_bounds = array<i64: 1, 2, 128>}]} {
    %c0 = arith.constant 0 : index
    %c0_0 = arith.constant 0 : index
    %0 = vector.load %arg1[%c0, %c0_0] : memref<8x128xf32, #tpu.memory_space<vmem>>, vector<8x128xf32>
    %c0_1 = arith.constant 0 : index
    %c0_2 = arith.constant 0 : index
    %1 = vector.load %arg2[%c0_1, %c0_2] : memref<128x128xf32, #tpu.memory_space<vmem>>, vector<128x128xf32>
    %cst = arith.constant dense<0.000000e+00> : vector<8x128xf32>
    %2 = tpu.matmul %0, %1, %cst {dimension_numbers = #tpu.dot_dimension_numbers<[1], [0], [0], [1], [0, 0, 1, 1], [], []>} : vector<8x128xf32>, vector<128x128xf32>, vector<8x128xf32> -> vector<8x128xf32>
    %c0_3 = arith.constant 0 : index
    %c0_4 = arith.constant 0 : index
    %3 = vector.load %arg3[%c0_3, %c0_4] : memref<8x128xf32, #tpu.memory_space<vmem>>, vector<8x128xf32>
    tpu.vector_store %arg3[%c0_3, %c0_4], %2 {strides = array<i32>} : memref<8x128xf32, #tpu.memory_space<vmem>>, vector<8x128xf32>,
    %cst_5 = arith.constant dense<0.000000e+00> : vector<128xf32>
    %4 = vector.multi_reduction <add>, %2, %cst_5 [0] : vector<8x128xf32> to vector<128xf32>
    %5 = vector.shape_cast %4 : vector<128xf32> to vector<1x128xf32>
    %6 = arith.mulf %2, %2 : vector<8x128xf32>
    %cst_6 = arith.constant dense<0.000000e+00> : vector<128xf32>
    %7 = vector.multi_reduction <add>, %6, %cst_6 [0] : vector<8x128xf32> to vector<128xf32>
    %8 = vector.shape_cast %7 : vector<128xf32> to vector<1x128xf32>
    %9 = tpu.concatenate %5, %8 in 0 : vector<1x128xf32>, vector<1x128xf32> -> vector<2x128xf32>
    %10 = vector.shape_cast %9 : vector<2x128xf32> to vector<1x2x128xf32>
    %c0_7 = arith.constant 0 : index
    %c0_8 = arith.constant 0 : index
    %c0_9 = arith.constant 0 : index
    %11 = vector.load %arg4[%c0_7, %c0_8, %c0_9] : memref<1x2x128xf32, #tpu.memory_space<vmem>>, vector<1x2x128xf32>
    tpu.vector_store %arg4[%c0_7, %c0_8, %c0_9], %10 {strides = array<i32>} : memref<1x2x128xf32, #tpu.memory_space<vmem>>, vector<1x2x128xf32>,
    return
  }
  func.func @transform_0(%arg0: i32) -> (i32, i32) {
    %c0_i32 = arith.constant 0 : i32
    %c0_i32_0 = arith.constant 0 : i32
    return %arg0, %c0_i32 : i32, i32
  }
  func.func @transform_1(%arg0: i32) -> (i32, i32) {
    %c0_i32 = arith.constant 0 : i32
    %c0_i32_0 = arith.constant 0 : i32
    %c0_i32_1 = arith.constant 0 : i32
    return %c0_i32, %c0_i32_0 : i32, i32
  }
  func.func @transform_2(%arg0: i32) -> (i32, i32) {
    %c0_i32 = arith.constant 0 : i32
    %c0_i32_0 = arith.constant 0 : i32
    return %arg0, %c0_i32 : i32, i32
  }
  func.func @transform_3(%arg0: i32) -> (i32, i32, i32) {
    %c0_i32 = arith.constant 0 : i32
    %c0_i32_0 = arith.constant 0 : i32
    %c0_i32_1 = arith.constant 0 : i32
    return %arg0, %c0_i32, %c0_i32_0 : i32, i32, i32
  }
}

</mosaic_0001>

<llo_original>
// kernel: tpu_custom_call.1
$region0: #{tpu_custom_call.1}
  #allocation0 [shape = 'u32[]', space=smem, size = 0x4, offset = 0x4, fixed_abs, tag = 'smem constant byte address 0x4 - core index']
  #allocation1 [shape = 'u32[144,128]{1,0:T(1,128)}', space=vmem, size = 0x12000, scoped, tag = 'internal scratch']
  %s0 = inlined_call_operand.hbm [shape: f32[8,128], index: 0, kind: input, shape index: {}]
  %s1 = inlined_call_operand.hbm [shape: f32[128,128], index: 1, kind: input, shape index: {}]
  %s2 = inlined_call_operand.hbm [shape: f32[8,128], index: 2, kind: output, shape index: {0}]
  %s3 = inlined_call_operand.hbm [shape: f32[1,2,128], index: 3, kind: output, shape index: {1}]
  %4 = xla_tuple %s2, %s3
  %s5 = sld [smem:[#allocation0]]
  $region34: #{tpu_custom_call.1} parent=0
    _
  %s7 = ssub.s32 1, %s5
  %s8 = scalar_select 0, %s7, %s5
  $region1: #{tpu_custom_call.1} parent=0
    #allocation2 [shape = 'u8[4096]{0}', space=vmem, size = 0x1000, scoped, tag = 'input window, operand 0, single buffered']
    #allocation3 [shape = 's32[1]{0}', space=sflag, size = 0x4, scoped, tag = 'scoped memory for tpu_custom_call.1']
    #allocation4 [shape = 's32[1]{0}', space=sflag, size = 0x4, scoped, tag = 'scoped memory for tpu_custom_call.1']
    #allocation5 [shape = 'u8[65536]{0}', space=vmem, size = 0x10000, scoped, tag = 'input window, operand 1, single buffered']
    #allocation6 [shape = 's32[1]{0}', space=sflag, size = 0x4, scoped, tag = 'scoped memory for tpu_custom_call.1']
    #allocation7 [shape = 'u8[4096]{0}', space=vmem, size = 0x1000, scoped, tag = 'output window, operand 0, single buffered']
    #allocation8 [shape = 'u8[1024]{0}', space=vmem, size = 0x400, scoped, tag = 'output window, operand 1, single buffered']
    #allocation9 [shape = 's32[1]{0}', space=sflag, size = 0x4, scoped, tag = 'scoped memory for tpu_custom_call.1']
    %9 = vsyncpa [#allocation3], 0
    %10 = vsyncpa [#allocation6], 0
    %11 = vsyncpa [#allocation4], 0
    %12 = vsyncpa [#allocation9], 0
    // Predicated region
    $region2: #{tpu_custom_call.1} parent=1 // pred_check
      _
    $region3: #{tpu_custom_call.1} parent=1 // pred_check_branch
      %14 = sbr.rel (0) target = $region5
    $region4: #{tpu_custom_call.1} parent=1 // pred_region
      %s16 = ssub.s32 128, 128
      %17 = vsyncadd [#allocation3], %s16
      %s19 = sshll.u32 [#allocation2], 4
      %s20 = int_to_ptr.vmem [resolvable:$true] %s19
      %22 = dma.hbm_to_vmem [thread:$0]  %s0, 128, %s20, [#allocation3]
    $region5: #{tpu_custom_call.1} parent=1 // pred_fallthru
      _
    // Predicated region
    $region6: #{tpu_custom_call.1} parent=1 // pred_check
      _
    $region7: #{tpu_custom_call.1} parent=1 // pred_check_branch
      %24 = sbr.rel (0) target = $region9
    $region8: #{tpu_custom_call.1} parent=1 // pred_region
      %s26 = ssub.s32 2048, 2048
      %27 = vsyncadd [#allocation6], %s26
      %s28 = sshll.u32 [#allocation5], 4
      %s29 = int_to_ptr.vmem [resolvable:$true] %s28
      %34 = dma.hbm_to_vmem [thread:$0]  %s1, 2048, %s29, [#allocation6], 128, 128, 8
    $region9: #{tpu_custom_call.1} parent=1 // pred_fallthru
      _
    // Predicated region
    $region10: #{tpu_custom_call.1} parent=1 // pred_check
      _
    $region11: #{tpu_custom_call.1} parent=1 // pred_check_branch
      %36 = sbr.rel (0) target = $region13
    $region12: #{tpu_custom_call.1} parent=1 // pred_region
      %37 = dma.done [#allocation3], 128
    $region13: #{tpu_custom_call.1} parent=1 // pred_fallthru
      _
    // Predicated region
    $region14: #{tpu_custom_call.1} parent=1 // pred_check
      _
    $region15: #{tpu_custom_call.1} parent=1 // pred_check_branch
      %39 = sbr.rel (0) target = $region17
    $region16: #{tpu_custom_call.1} parent=1 // pred_region
      %40 = dma.done [#allocation6], 2048
    $region17: #{tpu_custom_call.1} parent=1 // pred_fallthru
      _
    %v41 = vld [vmem:[#allocation2] sm:$0xff]
    %v42 = vld [vmem:[#allocation5] sm:$0xff]
    %v43 = vld [vmem:[#allocation5 + $0x8] sm:$0xff]
    %v44 = vld [vmem:[#allocation5 + $0x10] sm:$0xff]
    %v45 = vld [vmem:[#allocation5 + $0x18] sm:$0xff]
    %v46 = vld [vmem:[#allocation5 + $0x20] sm:$0xff]
    %v47 = vld [vmem:[#allocation5 + $0x28] sm:$0xff]
    %v48 = vld [vmem:[#allocation5 + $0x30] sm:$0xff]
    %v49 = vld [vmem:[#allocation5 + $0x38] sm:$0xff]
    %v50 = vld [vmem:[#allocation5 + $0x40] sm:$0xff]
    %v51 = vld [vmem:[#allocation5 + $0x48] sm:$0xff]
    %v52 = vld [vmem:[#allocation5 + $0x50] sm:$0xff]
    %v53 = vld [vmem:[#allocation5 + $0x58] sm:$0xff]
    %v54 = vld [vmem:[#allocation5 + $0x60] sm:$0xff]
    %v55 = vld [vmem:[#allocation5 + $0x68] sm:$0xff]
    %v56 = vld [vmem:[#allocation5 + $0x70] sm:$0xff]
    %v57 = vld [vmem:[#allocation5 + $0x78] sm:$0xff]
    %58 = vmatprep.subr.mxu0 0.0
    %59 = vmatpush1.msra.mxu0 %v57
    %60 = vmatprep.subr.mxu0 0.0
    %61 = vmatpush1.msra.mxu0 %v56
    %62 = vmatprep.subr.mxu0 0.0
    %63 = vmatpush1.msra.mxu0 %v55
    %64 = vmatprep.subr.mxu0 0.0
    %65 = vmatpush1.msra.mxu0 %v54
    %66 = vmatprep.subr.mxu0 0.0
    %67 = vmatpush1.msra.mxu0 %v53
    %68 = vmatprep.subr.mxu0 0.0
    %69 = vmatpush1.msra.mxu0 %v52
    %70 = vmatprep.subr.mxu0 0.0
    %71 = vmatpush1.msra.mxu0 %v51
    %72 = vmatprep.subr.mxu0 0.0
    %73 = vmatpush1.msra.mxu0 %v50
    %74 = vmatprep.subr.mxu0 0.0
    %75 = vmatpush1.msra.mxu0 %v49
    %76 = vmatprep.subr.mxu0 0.0
    %77 = vmatpush1.msra.mxu0 %v48
    %78 = vmatprep.subr.mxu0 0.0
    %79 = vmatpush1.msra.mxu0 %v47
    %80 = vmatprep.subr.mxu0 0.0
    %81 = vmatpush1.msra.mxu0 %v46
    %82 = vmatprep.subr.mxu0 0.0
    %83 = vmatpush1.msra.mxu0 %v45
    %84 = vmatprep.subr.mxu0 0.0
    %85 = vmatpush1.msra.mxu0 %v44
    %86 = vmatprep.subr.mxu0 0.0
    %87 = vmatpush1.msra.mxu0 %v43
    %88 = vmatprep.subr.mxu0 0.0
    %89 = vmatpush1.msra.mxu0 %v42
    %90 = vmatprep.subr.mxu0 0.0
    %91 = vmatpush2.msra.mxu0 0.0
    %92 = vmatprep.subr.mxu0 0.0
    %93 = vmatpush2.msra.mxu0 0.0
    %94 = vmatprep.subr.mxu0 0.0
    %95 = vmatpush2.msra.mxu0 0.0
    %96 = vmatprep.subr.mxu0 0.0
    %97 = vmatpush2.msra.mxu0 0.0
    %98 = vmatprep.subr.mxu0 0.0
    %99 = vmatpush2.msra.mxu0 0.0
    %100 = vmatprep.subr.mxu0 0.0
    %101 = vmatpush2.msra.mxu0 0.0
    %102 = vmatprep.subr.mxu0 0.0
    %103 = vmatpush2.msra.mxu0 0.0
    %104 = vmatprep.subr.mxu0 0.0
    %105 = vmatpush2.msra.mxu0 0.0
    %106 = vmatprep.subr.mxu0 0.0
    %107 = vmatpush2.msra.mxu0 0.0
    %108 = vmatprep.subr.mxu0 0.0
    %109 = vmatpush2.msra.mxu0 0.0
    %110 = vmatprep.subr.mxu0 0.0
    %111 = vmatpush2.msra.mxu0 0.0
    %112 = vmatprep.subr.mxu0 0.0
    %113 = vmatpush2.msra.mxu0 0.0
    %114 = vmatprep.subr.mxu0 0.0
    %115 = vmatpush2.msra.mxu0 0.0
    %116 = vmatprep.subr.mxu0 0.0
    %117 = vmatpush2.msra.mxu0 0.0
    %118 = vmatprep.subr.mxu0 0.0
    %119 = vmatpush2.msra.mxu0 0.0
    %120 = vmatprep.subr.mxu0 0.0
    %121 = vmatpush2.msra.mxu0 0.0
    %122 = vmatprep.mubr.f32.mxu0 0.0
    %123 = vmatmul.mubr.f32.gmra.mxu0 %v41
    %v124 = vpop.f32.mrf.mxu0
    %v125 = vadd.f32 0.0, %v124
    %v126 = vpop.f32.mrf.mxu0
    %127 = vdwg.mxu0
    %128 = vst [vmem:[#allocation7] sm:$0xff] %v125
    %v129 = vrot.slane %v125, 4
    %v130 = vadd.f32 %v125, %v129
    %v131 = vrot.slane %v130, 2
    %v132 = vadd.f32 %v130, %v131
    %v133 = vrot.slane %v132, 1
    %v134 = vadd.f32 %v132, %v133
    %v135 = vmul.f32 %v125, %v125
    %v136 = vrot.slane %v135, 4
    %v137 = vadd.f32 %v135, %v136
    %v138 = vrot.slane %v137, 2
    %v139 = vadd.f32 %v137, %v138
    %v140 = vrot.slane %v139, 1
    %v141 = vadd.f32 %v139, %v140
    %vm142 = vcmask 1040384
    %v143 = vsel %vm142, %v134, %v141
    %144 = vst [vmem:[#allocation8] sm:$0x3] %v143
    // Predicated region
    $region18: #{tpu_custom_call.1} parent=1 // pred_check
      _
    $region19: #{tpu_custom_call.1} parent=1 // pred_check_branch
      %146 = sbr.rel (0) target = $region21
    $region20: #{tpu_custom_call.1} parent=1 // pred_region
      %s148 = ssub.s32 128, 128
      %149 = vsyncadd [#allocation4], %s148
      %s151 = sshll.u32 [#allocation7], 4
      %s152 = int_to_ptr.vmem [resolvable:$true] %s151
      %154 = dma.vmem_to_hbm [thread:$0]  %s152, 128, %s2, [#allocation4]
    $region21: #{tpu_custom_call.1} parent=1 // pred_fallthru
      _
    // Predicated region
    $region22: #{tpu_custom_call.1} parent=1 // pred_check
      _
    $region23: #{tpu_custom_call.1} parent=1 // pred_check_branch
      %156 = sbr.rel (0) target = $region25
    $region24: #{tpu_custom_call.1} parent=1 // pred_region
      %s158 = ssub.s32 32, 32
      %159 = vsyncadd [#allocation9], %s158
      %s161 = sshll.u32 [#allocation8], 4
      %s162 = int_to_ptr.vmem [resolvable:$true] %s161
      %164 = dma.vmem_to_hbm [thread:$0]  %s162, 32, %s3, [#allocation9]
    $region25: #{tpu_custom_call.1} parent=1 // pred_fallthru
      _
    // Predicated region
    $region26: #{tpu_custom_call.1} parent=1 // pred_check
      _
    $region27: #{tpu_custom_call.1} parent=1 // pred_check_branch
      %166 = sbr.rel (0) target = $region29
    $region28: #{tpu_custom_call.1} parent=1 // pred_region
      %167 = dma.done [#allocation4], 128
    $region29: #{tpu_custom_call.1} parent=1 // pred_fallthru
      _
    // Predicated region
    $region30: #{tpu_custom_call.1} parent=1 // pred_check
      _
    $region31: #{tpu_custom_call.1} parent=1 // pred_check_branch
      %169 = sbr.rel (0) target = $region33
    $region32: #{tpu_custom_call.1} parent=1 // pred_region
      %170 = dma.done [#allocation9], 32
    $region33: #{tpu_custom_call.1} parent=1 // pred_fallthru
      _
    %171 = vsyncpa [#allocation3], 1
    %172 = vsyncpa [#allocation6], 1
    %173 = vsyncpa [#allocation4], 1
    %174 = vsyncpa [#allocation9], 1

</llo_original>
